<compile_context>
chip_gen: v7x
topology: tpu7x:2x2x1
jax: 0.10.0
libtpu: 0.0.40
codegen_flags: <defaults>
</compile_context>

<pallas_src>
import functools

import jax
import jax.numpy as jnp
from jax.experimental import pallas as pl
from jax.experimental.pallas import tpu as pltpu

_LANE = 128
_SUBLANE = 8


def _round_up(n, m):
    return ((n + m - 1) // m) * m


def _mlp_kernel(x_ref, w1_ref, w2_ref, w3_ref, o_ref):
    """Fused 3-layer MLP on one (TILE_B, in_dim) batch tile.

    Weights are whole, zero-padded, lane-dense arrays with constant index_maps,
    so they stay VMEM-resident across grid steps (no re-DMA).
    """
    cdt = w1_ref.dtype                      # MXU compute dtype (bf16 by default)
    x = x_ref[...].astype(cdt)              # cast in-kernel; x is only in_dim lanes wide

    h1 = jnp.dot(x, w1_ref[...], preferred_element_type=jnp.float32)
    h1 = jnp.maximum(h1, 0.2 * h1)          # LeakyReLU(0.2): 2 VALU ops, f32 path

    h2 = jnp.dot(h1.astype(cdt), w2_ref[...], preferred_element_type=jnp.float32)
    h2 = jnp.maximum(h2, 0.2 * h2)

    h3 = jnp.dot(h2.astype(cdt), w3_ref[...], preferred_element_type=jnp.float32)
    o_ref[...] = jnp.tanh(h3).astype(o_ref.dtype)   # lane-dense bf16 store


def prepare_params(w1, w2, w3, compute_dtype=jnp.bfloat16):
    """Pad + cast the weights ONCE (outside the per-call forward path).

    Weights are (in_features, out_features), i.e. x @ W == torch's x @ W.T.
    Feature dims are zero-padded to 128 lanes (exact for this network).
    """
    in_dim, hid = w1.shape
    out_dim = w3.shape[1]
    hid_p = _round_up(max(hid, _LANE), _LANE)
    out_p = _round_up(max(out_dim, _LANE), _LANE)

    w1_p = jnp.zeros((in_dim, hid_p), compute_dtype).at[:, :hid].set(w1.astype(compute_dtype))
    w2_p = jnp.zeros((hid_p, hid_p), compute_dtype).at[:hid, :hid].set(w2.astype(compute_dtype))
    w3_p = jnp.zeros((hid_p, out_p), compute_dtype).at[:hid, :out_dim].set(w3.astype(compute_dtype))
    return w1_p, w2_p, w3_p, out_dim


@functools.partial(jax.jit, static_argnames=("out_dim", "tile_b"))
def _forward_padded(x, w1_p, w2_p, w3_p, *, out_dim, tile_b):
    B, in_dim = x.shape
    hid_p = w1_p.shape[1]
    out_p = w3_p.shape[1]

    # ---- batch tiling (all static ints under jit) ----
    b_aligned = _round_up(B, _SUBLANE)
    tb = min(tile_b, b_aligned)
    # Guarantee >= 2 grid steps when there is enough work so the "parallel"
    # batch axis can actually be split across v7x's two TensorCores.
    if tb >= b_aligned and b_aligned > _SUBLANE:
        tb = _round_up((b_aligned + 1) // 2, _SUBLANE)
    b_pad = _round_up(max(B, tb), tb)

    x_p = x if b_pad == B else jnp.zeros((b_pad, in_dim), x.dtype).at[:B, :].set(x)

    grid = (b_pad // tb,)

    out = pl.pallas_call(
        _mlp_kernel,
        out_shape=jax.ShapeDtypeStruct((b_pad, out_p), jnp.bfloat16),  # bf16: halve writeback
        grid=grid,
        in_specs=[
            pl.BlockSpec((tb, in_dim), lambda i: (i, 0)),      # batch-tiled activations
            pl.BlockSpec((in_dim, hid_p), lambda i: (0, 0)),   # weights: constant index_map
            pl.BlockSpec((hid_p, hid_p), lambda i: (0, 0)),    #   -> VMEM-resident, no re-DMA
            pl.BlockSpec((hid_p, out_p), lambda i: (0, 0)),
        ],
        out_specs=pl.BlockSpec((tb, out_p), lambda i: (i, 0)),  # lane-dense 128-wide store
        compiler_params=pltpu.CompilerParams(
            dimension_semantics=("parallel",),                  # megacore batch split
        ),
    )(x_p, w1_p, w2_p, w3_p)

    # Slice away padding; tiny cast back to f32 (fused under jit).
    return out[:B, :out_dim].astype(jnp.float32)


def neural_network_forward(x, params, *, tile_b=2048):
    """x: (B, in_dim) f32; params: output of prepare_params()."""
    w1_p, w2_p, w3_p, out_dim = params
    return _forward_padded(x, w1_p, w2_p, w3_p, out_dim=out_dim, tile_b=tile_b)


def init_params(key, in_dim, out_dim, hidden=36):
    """Deterministic init mimicking nn.Linear's Kaiming-uniform
    (U[-1/sqrt(fan_in), 1/sqrt(fan_in)]); weights transposed to (in, out)."""
    k1, k2, k3 = jax.random.split(key, 3)

    def u(k, fan_in, shape):
        bound = 1.0 / jnp.sqrt(fan_in)
        return jax.random.uniform(k, shape, jnp.float32, -bound, bound)

    w1 = u(k1, in_dim, (in_dim, hidden))
    w2 = u(k2, hidden, (hidden, hidden))
    w3 = u(k3, hidden, (hidden, out_dim))
    return w1, w2, w3


def _reference(x, w1, w2, w3, compute_dtype=jnp.bfloat16):
    """Pure-JAX reference mirroring the kernel's dtype handling
    (bf16 inputs to the matmuls, f32 accumulation, bf16 output store)."""
    cd = compute_dtype

    def lrelu(v):
        return jnp.maximum(v, 0.2 * v)

    h = lrelu(jnp.dot(x.astype(cd), w1.astype(cd), preferred_element_type=jnp.float32))
    h = lrelu(jnp.dot(h.astype(cd), w2.astype(cd), preferred_element_type=jnp.float32))
    y = jnp.tanh(jnp.dot(h.astype(cd), w3.astype(cd), preferred_element_type=jnp.float32))
    return y.astype(jnp.bfloat16).astype(jnp.float32)


if __name__ == "__main__":
    # LunarLanderContinuous-v2: observation dim = 8, action dim = 2.
    IN_DIM, OUT_DIM = 8, 2

    key = jax.random.PRNGKey(0)
    kx, kp, kx2 = jax.random.split(key, 3)
    w1, w2, w3 = init_params(kp, IN_DIM, OUT_DIM)

    # Pad/cast the weights once (hoisted out of the per-call forward path).
    params = prepare_params(w1, w2, w3)

    # Small case (single policy rollout, B=2).
    B = 2
    x = jax.random.normal(kx, (B, IN_DIM), jnp.float32)
    out = jax.block_until_ready(neural_network_forward(x, params))
    ref = _reference(x, w1, w2, w3)
    assert out.shape == (B, OUT_DIM)
    assert jnp.allclose(out, ref, atol=1e-2, rtol=1e-2), "mismatch vs reference (B=2)"

    # Batched case (population of candidates): exercises grid >= 2, batch padding,
    # and the two-TensorCore split path on v7x.
    B2 = 700
    x2 = jax.random.normal(kx2, (B2, IN_DIM), jnp.float32)
    out2 = jax.block_until_ready(neural_network_forward(x2, params))
    ref2 = _reference(x2, w1, w2, w3)
    assert out2.shape == (B2, OUT_DIM)
    assert jnp.allclose(out2, ref2, atol=1e-2, rtol=1e-2), "mismatch vs reference (B=700)"

    print("KERNEL_OK")
</pallas_src>

<mosaic_0001>
module attributes {stable_mosaic.version = 11 : i64} {
  func.func @_mlp_kernel(%arg0: i32, %arg1: memref<8x8xf32, #tpu.memory_space<vmem>>, %arg2: memref<8x128xbf16, #tpu.memory_space<vmem>>, %arg3: memref<128x128xbf16, #tpu.memory_space<vmem>>, %arg4: memref<128x128xbf16, #tpu.memory_space<vmem>>, %arg5: memref<8x128xbf16, #tpu.memory_space<vmem>>) attributes {dimension_semantics = [#tpu.dimension_semantics<parallel>], iteration_bounds = array<i64: 1>, scalar_prefetch = 0 : i64, scratch_operands = 0 : i64, tpu.core_type = #tpu.core_type<tc>, window_params = [{transform_indices = @transform_0, window_bounds = array<i64: 8, 8>}, {pipeline_mode = #tpu.pipeline_mode<synchronous>, transform_indices = @transform_1, window_bounds = array<i64: 8, 128>}, {pipeline_mode = #tpu.pipeline_mode<synchronous>, transform_indices = @transform_2, window_bounds = array<i64: 128, 128>}, {pipeline_mode = #tpu.pipeline_mode<synchronous>, transform_indices = @transform_3, window_bounds = array<i64: 128, 128>}, {transform_indices = @transform_4, window_bounds = array<i64: 8, 128>}]} {
    %c0 = arith.constant 0 : index
    %c0_0 = arith.constant 0 : index
    %0 = vector.load %arg1[%c0, %c0_0] : memref<8x8xf32, #tpu.memory_space<vmem>>, vector<8x8xf32>
    %1 = arith.truncf %0 : vector<8x8xf32> to vector<8x8xbf16>
    %c0_1 = arith.constant 0 : index
    %c0_2 = arith.constant 0 : index
    %2 = vector.load %arg2[%c0_1, %c0_2] : memref<8x128xbf16, #tpu.memory_space<vmem>>, vector<8x128xbf16>
    %cst = arith.constant dense<0.000000e+00> : vector<8x128xf32>
    %3 = tpu.matmul %1, %2, %cst {dimension_numbers = #tpu.dot_dimension_numbers<[1], [0], [0], [1], [0, 0, 1, 1], [], []>} : vector<8x8xbf16>, vector<8x128xbf16>, vector<8x128xf32> -> vector<8x128xf32>
    %cst_3 = arith.constant 2.000000e-01 : f32
    %4 = vector.broadcast %cst_3 : f32 to vector<8x128xf32>
    %5 = arith.mulf %4, %3 : vector<8x128xf32>
    %6 = arith.maximumf %3, %5 : vector<8x128xf32>
    %7 = arith.truncf %6 : vector<8x128xf32> to vector<8x128xbf16>
    %c0_4 = arith.constant 0 : index
    %c0_5 = arith.constant 0 : index
    %8 = vector.load %arg3[%c0_4, %c0_5] : memref<128x128xbf16, #tpu.memory_space<vmem>>, vector<128x128xbf16>
    %cst_6 = arith.constant dense<0.000000e+00> : vector<8x128xf32>
    %9 = tpu.matmul %7, %8, %cst_6 {dimension_numbers = #tpu.dot_dimension_numbers<[1], [0], [0], [1], [0, 0, 1, 1], [], []>} : vector<8x128xbf16>, vector<128x128xbf16>, vector<8x128xf32> -> vector<8x128xf32>
    %cst_7 = arith.constant 2.000000e-01 : f32
    %10 = vector.broadcast %cst_7 : f32 to vector<8x128xf32>
    %11 = arith.mulf %10, %9 : vector<8x128xf32>
    %12 = arith.maximumf %9, %11 : vector<8x128xf32>
    %13 = arith.truncf %12 : vector<8x128xf32> to vector<8x128xbf16>
    %c0_8 = arith.constant 0 : index
    %c0_9 = arith.constant 0 : index
    %14 = vector.load %arg4[%c0_8, %c0_9] : memref<128x128xbf16, #tpu.memory_space<vmem>>, vector<128x128xbf16>
    %cst_10 = arith.constant dense<0.000000e+00> : vector<8x128xf32>
    %15 = tpu.matmul %13, %14, %cst_10 {dimension_numbers = #tpu.dot_dimension_numbers<[1], [0], [0], [1], [0, 0, 1, 1], [], []>} : vector<8x128xbf16>, vector<128x128xbf16>, vector<8x128xf32> -> vector<8x128xf32>
    %16 = math.tanh %15 : vector<8x128xf32>
    %17 = arith.truncf %16 : vector<8x128xf32> to vector<8x128xbf16>
    %c0_11 = arith.constant 0 : index
    %c0_12 = arith.constant 0 : index
    %18 = vector.load %arg5[%c0_11, %c0_12] : memref<8x128xbf16, #tpu.memory_space<vmem>>, vector<8x128xbf16>
    tpu.vector_store %arg5[%c0_11, %c0_12], %17 {strides = array<i32>} : memref<8x128xbf16, #tpu.memory_space<vmem>>, vector<8x128xbf16>,
    return
  }
  func.func @transform_0(%arg0: i32) -> (i32, i32) {
    %c0_i32 = arith.constant 0 : i32
    %c0_i32_0 = arith.constant 0 : i32
    return %arg0, %c0_i32 : i32, i32
  }
  func.func @transform_1(%arg0: i32) -> (i32, i32) {
    %c0_i32 = arith.constant 0 : i32
    %c0_i32_0 = arith.constant 0 : i32
    %c0_i32_1 = arith.constant 0 : i32
    return %c0_i32, %c0_i32_0 : i32, i32
  }
  func.func @transform_2(%arg0: i32) -> (i32, i32) {
    %c0_i32 = arith.constant 0 : i32
    %c0_i32_0 = arith.constant 0 : i32
    %c0_i32_1 = arith.constant 0 : i32
    return %c0_i32, %c0_i32_0 : i32, i32
  }
  func.func @transform_3(%arg0: i32) -> (i32, i32) {
    %c0_i32 = arith.constant 0 : i32
    %c0_i32_0 = arith.constant 0 : i32
    %c0_i32_1 = arith.constant 0 : i32
    return %c0_i32, %c0_i32_0 : i32, i32
  }
  func.func @transform_4(%arg0: i32) -> (i32, i32) {
    %c0_i32 = arith.constant 0 : i32
    %c0_i32_0 = arith.constant 0 : i32
    return %arg0, %c0_i32 : i32, i32
  }
}

</mosaic_0001>

<llo_original>
// kernel: _forward_padded.1
$region0: #{_forward_padded.1}
  #allocation0 [shape = 'u32[]', space=smem, size = 0x4, offset = 0x4, fixed_abs, tag = 'smem constant byte address 0x4 - core index']
  #allocation1 [shape = 'u32[144,128]{1,0:T(1,128)}', space=vmem, size = 0x12000, scoped, tag = 'internal scratch']
  %s0 = inlined_call_operand.vmem [shape: f32[8,8], index: 0, kind: input, shape index: {}]
  %s1 = inlined_call_operand.vmem [shape: bf16[8,128], index: 1, kind: input, shape index: {}]
  %s2 = inlined_call_operand.hbm [shape: bf16[128,128], index: 2, kind: input, shape index: {}]
  %s3 = inlined_call_operand.hbm [shape: bf16[128,128], index: 3, kind: input, shape index: {}]
  %s4 = inlined_call_operand.vmem [shape: bf16[8,128], index: 4, kind: output, shape index: {}]
  %s5 = sld [smem:[#allocation0]]
  $region34: #{_forward_padded.1} parent=0
    _
  %s7 = ssub.s32 1, %s5
  %s8 = scalar_select 0, %s7, %s5
  $region1: #{_forward_padded.1} parent=0
    #allocation2 [shape = 'u8[32768]{0}', space=vmem, size = 0x8000, scoped, tag = 'input window, operand 2, single buffered']
    #allocation3 [shape = 's32[1]{0}', space=sflag, size = 0x4, scoped, tag = 'scoped memory for _forward_padded.1']
    #allocation4 [shape = 'u8[32768]{0}', space=vmem, size = 0x8000, scoped, tag = 'input window, operand 3, single buffered']
    #allocation5 [shape = 's32[1]{0}', space=sflag, size = 0x4, scoped, tag = 'scoped memory for _forward_padded.1']
    %9 = vsyncpa [#allocation3], 0
    %10 = vsyncpa [#allocation5], 0
    // Predicated region
    $region2: #{_forward_padded.1} parent=1 // pred_check
      _
    $region3: #{_forward_padded.1} parent=1 // pred_check_branch
      %12 = sbr.rel (0) target = $region5
    $region4: #{_forward_padded.1} parent=1 // pred_region
      _
    $region5: #{_forward_padded.1} parent=1 // pred_fallthru
      _
    // Predicated region
    $region6: #{_forward_padded.1} parent=1 // pred_check
      _
    $region7: #{_forward_padded.1} parent=1 // pred_check_branch
      %14 = sbr.rel (0) target = $region9
    $region8: #{_forward_padded.1} parent=1 // pred_region
      _
    $region9: #{_forward_padded.1} parent=1 // pred_fallthru
      _
    // Predicated region
    $region10: #{_forward_padded.1} parent=1 // pred_check
      _
    $region11: #{_forward_padded.1} parent=1 // pred_check_branch
      %16 = sbr.rel (0) target = $region13
    $region12: #{_forward_padded.1} parent=1 // pred_region
      %s18 = ssub.s32 1024, 1024
      %19 = vsyncadd [#allocation3], %s18
      %s20 = sshll.u32 [#allocation2], 4
      %s21 = int_to_ptr.vmem [resolvable:$true] %s20
      %26 = dma.hbm_to_vmem [thread:$0]  %s2, 1024, %s21, [#allocation3], 64, 64, 4
    $region13: #{_forward_padded.1} parent=1 // pred_fallthru
      _
    // Predicated region
    $region14: #{_forward_padded.1} parent=1 // pred_check
      _
    $region15: #{_forward_padded.1} parent=1 // pred_check_branch
      %28 = sbr.rel (0) target = $region17
    $region16: #{_forward_padded.1} parent=1 // pred_region
      %s30 = ssub.s32 1024, 1024
      %31 = vsyncadd [#allocation5], %s30
      %s32 = sshll.u32 [#allocation4], 4
      %s33 = int_to_ptr.vmem [resolvable:$true] %s32
      %38 = dma.hbm_to_vmem [thread:$0]  %s3, 1024, %s33, [#allocation5], 64, 64, 4
    $region17: #{_forward_padded.1} parent=1 // pred_fallthru
      _
    // Predicated region
    $region18: #{_forward_padded.1} parent=1 // pred_check
      _
    $region19: #{_forward_padded.1} parent=1 // pred_check_branch
      %40 = sbr.rel (0) target = $region21
    $region20: #{_forward_padded.1} parent=1 // pred_region
      %41 = dma.done [#allocation3], 1024
    $region21: #{_forward_padded.1} parent=1 // pred_fallthru
      _
    // Predicated region
    $region22: #{_forward_padded.1} parent=1 // pred_check
      _
    $region23: #{_forward_padded.1} parent=1 // pred_check_branch
      %43 = sbr.rel (0) target = $region25
    $region24: #{_forward_padded.1} parent=1 // pred_region
      %44 = dma.done [#allocation5], 1024
    $region25: #{_forward_padded.1} parent=1 // pred_fallthru
      _
    %v46 = vld [vmem:[%s0] sm:$0xff]
    %v47 = vpack.c.bf16 %v46, %v46
    %v48 = vld [vmem:[%s1] sm:$0xf]
    %vm49 = vcmask 64512
    %v51 = vsel %vm49, %v47, 0
    %vm53 = vcmask 1043456
    %v55 = vsel %vm53, %v48, 0
    %57 = vmatprep.subr.bf16.mxu0 0
    %58 = vmatpush1.bf16.msra.mxu0 %v55
    %59 = vmatprep.subr.bf16.mxu0 0
    %60 = vmatpush1.bf16.msra.mxu0 0
    %61 = vmatprep.subr.bf16.mxu0 0
    %62 = vmatpush1.bf16.msra.mxu0 0
    %63 = vmatprep.subr.bf16.mxu0 0
    %64 = vmatpush1.bf16.msra.mxu0 0
    %65 = vmatprep.subr.bf16.mxu0 0
    %66 = vmatpush1.bf16.msra.mxu0 0
    %67 = vmatprep.subr.bf16.mxu0 0
    %68 = vmatpush1.bf16.msra.mxu0 0
    %69 = vmatprep.subr.bf16.mxu0 0
    %70 = vmatpush1.bf16.msra.mxu0 0
    %71 = vmatprep.subr.bf16.mxu0 0
    %72 = vmatpush1.bf16.msra.mxu0 0
    %73 = vmatprep.subr.bf16.mxu0 0
    %74 = vmatpush1.bf16.msra.mxu0 0
    %75 = vmatprep.subr.bf16.mxu0 0
    %76 = vmatpush1.bf16.msra.mxu0 0
    %77 = vmatprep.subr.bf16.mxu0 0
    %78 = vmatpush1.bf16.msra.mxu0 0
    %79 = vmatprep.subr.bf16.mxu0 0
    %80 = vmatpush1.bf16.msra.mxu0 0
    %81 = vmatprep.subr.bf16.mxu0 0
    %82 = vmatpush1.bf16.msra.mxu0 0
    %83 = vmatprep.subr.bf16.mxu0 0
    %84 = vmatpush1.bf16.msra.mxu0 0
    %85 = vmatprep.subr.bf16.mxu0 0
    %86 = vmatpush1.bf16.msra.mxu0 0
    %87 = vmatprep.subr.bf16.mxu0 0
    %88 = vmatpush1.bf16.msra.mxu0 0
    %89 = vmatprep.mubr.bf16.mxu0 0
    %90 = vmatmul.mubr.bf16.gmra.mrb[0].mxu0 %v51
    %v91 = vpop.f32.mrb[0].mxu0
    %v92 = vadd.f32 0.0, %v91
    %v93 = vpop.f32.mrb[0].mxu0
    %v94 = vpop.f32.mrb[0].mxu0
    %v95 = vpop.f32.mrb[0].mxu0
    %96 = vdwg.mxu0
    %v97 = vmul.f32 %v92, 0.2
    %v98 = vmax.f32 %v92, %v97
    %v99 = vpack.c.bf16 %v98, %v98
    %v100 = vld [vmem:[#allocation2] sm:$0xf]
    %v101 = vld [vmem:[#allocation2 + $0x4] sm:$0xf]
    %v102 = vld [vmem:[#allocation2 + $0x8] sm:$0xf]
    %v103 = vld [vmem:[#allocation2 + $0xc] sm:$0xf]
    %v104 = vld [vmem:[#allocation2 + $0x10] sm:$0xf]
    %v105 = vld [vmem:[#allocation2 + $0x14] sm:$0xf]
    %v106 = vld [vmem:[#allocation2 + $0x18] sm:$0xf]
    %v107 = vld [vmem:[#allocation2 + $0x1c] sm:$0xf]
    %v108 = vld [vmem:[#allocation2 + $0x20] sm:$0xf]
    %v109 = vld [vmem:[#allocation2 + $0x24] sm:$0xf]
    %v110 = vld [vmem:[#allocation2 + $0x28] sm:$0xf]
    %v111 = vld [vmem:[#allocation2 + $0x2c] sm:$0xf]
    %v112 = vld [vmem:[#allocation2 + $0x30] sm:$0xf]
    %v113 = vld [vmem:[#allocation2 + $0x34] sm:$0xf]
    %v114 = vld [vmem:[#allocation2 + $0x38] sm:$0xf]
    %v115 = vld [vmem:[#allocation2 + $0x3c] sm:$0xf]
    %v132 = vunpack.c.l.b16 %v100
    %v133 = vunpack.c.l.b16 %v101
    %v134 = vunpack.c.l.b16 %v102
    %v135 = vunpack.c.l.b16 %v103
    %v136 = vunpack.c.l.b16 %v104
    %v137 = vunpack.c.l.b16 %v105
    %v138 = vunpack.c.l.b16 %v106
    %v139 = vunpack.c.l.b16 %v107
    %v140 = vunpack.c.l.b16 %v108
    %v141 = vunpack.c.l.b16 %v109
    %v142 = vunpack.c.l.b16 %v110
    %v143 = vunpack.c.l.b16 %v111
    %v144 = vunpack.c.l.b16 %v112
    %v145 = vunpack.c.l.b16 %v113
    %v146 = vunpack.c.l.b16 %v114
    %v147 = vunpack.c.l.b16 %v115
    %v148 = vpack.c.b16 %v133, %v132
    %v149 = vpack.c.b16 %v135, %v134
    %v150 = vpack.c.b16 %v137, %v136
    %v151 = vpack.c.b16 %v139, %v138
    %v152 = vpack.c.b16 %v141, %v140
    %v153 = vpack.c.b16 %v143, %v142
    %v154 = vpack.c.b16 %v145, %v144
    %v155 = vpack.c.b16 %v147, %v146
    %164 = vmatprep.subr.bf16.mxu0 0
    %165 = vmatpush1.bf16.msra.mxu0 %v148
    %166 = vmatprep.subr.bf16.mxu0 0
    %167 = vmatpush1.bf16.msra.mxu0 %v149
    %168 = vmatprep.subr.bf16.mxu0 0
    %169 = vmatpush1.bf16.msra.mxu0 %v150
    %170 = vmatprep.subr.bf16.mxu0 0
    %171 = vmatpush1.bf16.msra.mxu0 %v151
    %172 = vmatprep.subr.bf16.mxu0 0
    %173 = vmatpush1.bf16.msra.mxu0 %v152
    %174 = vmatprep.subr.bf16.mxu0 0
    %175 = vmatpush1.bf16.msra.mxu0 %v153
    %176 = vmatprep.subr.bf16.mxu0 0
    %177 = vmatpush1.bf16.msra.mxu0 %v154
    %178 = vmatprep.subr.bf16.mxu0 0
    %179 = vmatpush1.bf16.msra.mxu0 %v155
    %180 = vmatprep.subr.bf16.mxu0 0
    %181 = vmatpush1.bf16.msra.mxu0 0
    %182 = vmatprep.subr.bf16.mxu0 0
    %183 = vmatpush1.bf16.msra.mxu0 0
    %184 = vmatprep.subr.bf16.mxu0 0
    %185 = vmatpush1.bf16.msra.mxu0 0
    %186 = vmatprep.subr.bf16.mxu0 0
    %187 = vmatpush1.bf16.msra.mxu0 0
    %188 = vmatprep.subr.bf16.mxu0 0
    %189 = vmatpush1.bf16.msra.mxu0 0
    %190 = vmatprep.subr.bf16.mxu0 0
    %191 = vmatpush1.bf16.msra.mxu0 0
    %192 = vmatprep.subr.bf16.mxu0 0
    %193 = vmatpush1.bf16.msra.mxu0 0
    %194 = vmatprep.subr.bf16.mxu0 0
    %195 = vmatpush1.bf16.msra.mxu0 0
    %196 = vmatprep.mubr.bf16.mxu0 0
    %197 = vmatmul.mubr.bf16.gmra.mrb[0].mxu0 %v99
    %v198 = vpop.f32.mrb[0].mxu0
    %v199 = vadd.f32 0.0, %v198
    %v200 = vpop.f32.mrb[0].mxu0
    %v201 = vpop.f32.mrb[0].mxu0
    %v202 = vpop.f32.mrb[0].mxu0
    %203 = vdwg.mxu0
    %v204 = vmul.f32 %v199, 0.2
    %v205 = vmax.f32 %v199, %v204
    %v206 = vpack.c.bf16 %v205, %v205
    %v207 = vld [vmem:[#allocation4] sm:$0xf]
    %v208 = vld [vmem:[#allocation4 + $0x4] sm:$0xf]
    %v209 = vld [vmem:[#allocation4 + $0x8] sm:$0xf]
    %v210 = vld [vmem:[#allocation4 + $0xc] sm:$0xf]
    %v211 = vld [vmem:[#allocation4 + $0x10] sm:$0xf]
    %v212 = vld [vmem:[#allocation4 + $0x14] sm:$0xf]
    %v213 = vld [vmem:[#allocation4 + $0x18] sm:$0xf]
    %v214 = vld [vmem:[#allocation4 + $0x1c] sm:$0xf]
    %v215 = vld [vmem:[#allocation4 + $0x20] sm:$0xf]
    %v216 = vld [vmem:[#allocation4 + $0x24] sm:$0xf]
    %v217 = vld [vmem:[#allocation4 + $0x28] sm:$0xf]
    %v218 = vld [vmem:[#allocation4 + $0x2c] sm:$0xf]
    %v219 = vld [vmem:[#allocation4 + $0x30] sm:$0xf]
    %v220 = vld [vmem:[#allocation4 + $0x34] sm:$0xf]
    %v221 = vld [vmem:[#allocation4 + $0x38] sm:$0xf]
    %v222 = vld [vmem:[#allocation4 + $0x3c] sm:$0xf]
    %v239 = vunpack.c.l.b16 %v207
    %v240 = vunpack.c.l.b16 %v208
    %v241 = vunpack.c.l.b16 %v209
    %v242 = vunpack.c.l.b16 %v210
    %v243 = vunpack.c.l.b16 %v211
    %v244 = vunpack.c.l.b16 %v212
    %v245 = vunpack.c.l.b16 %v213
    %v246 = vunpack.c.l.b16 %v214
    %v247 = vunpack.c.l.b16 %v215
    %v248 = vunpack.c.l.b16 %v216
    %v249 = vunpack.c.l.b16 %v217
    %v250 = vunpack.c.l.b16 %v218
    %v251 = vunpack.c.l.b16 %v219
    %v252 = vunpack.c.l.b16 %v220
    %v253 = vunpack.c.l.b16 %v221
    %v254 = vunpack.c.l.b16 %v222
    %v255 = vpack.c.b16 %v240, %v239
    %v256 = vpack.c.b16 %v242, %v241
    %v257 = vpack.c.b16 %v244, %v243
    %v258 = vpack.c.b16 %v246, %v245
    %v259 = vpack.c.b16 %v248, %v247
    %v260 = vpack.c.b16 %v250, %v249
    %v261 = vpack.c.b16 %v252, %v251
    %v262 = vpack.c.b16 %v254, %v253
    %271 = vmatprep.subr.bf16.mxu0 0
    %272 = vmatpush1.bf16.msra.mxu0 %v255
    %273 = vmatprep.subr.bf16.mxu0 0
    %274 = vmatpush1.bf16.msra.mxu0 %v256
    %275 = vmatprep.subr.bf16.mxu0 0
    %276 = vmatpush1.bf16.msra.mxu0 %v257
    %277 = vmatprep.subr.bf16.mxu0 0
    %278 = vmatpush1.bf16.msra.mxu0 %v258
    %279 = vmatprep.subr.bf16.mxu0 0
    %280 = vmatpush1.bf16.msra.mxu0 %v259
    %281 = vmatprep.subr.bf16.mxu0 0
    %282 = vmatpush1.bf16.msra.mxu0 %v260
    %283 = vmatprep.subr.bf16.mxu0 0
    %284 = vmatpush1.bf16.msra.mxu0 %v261
    %285 = vmatprep.subr.bf16.mxu0 0
    %286 = vmatpush1.bf16.msra.mxu0 %v262
    %287 = vmatprep.subr.bf16.mxu0 0
    %288 = vmatpush1.bf16.msra.mxu0 0
    %289 = vmatprep.subr.bf16.mxu0 0
    %290 = vmatpush1.bf16.msra.mxu0 0
    %291 = vmatprep.subr.bf16.mxu0 0
    %292 = vmatpush1.bf16.msra.mxu0 0
    %293 = vmatprep.subr.bf16.mxu0 0
    %294 = vmatpush1.bf16.msra.mxu0 0
    %295 = vmatprep.subr.bf16.mxu0 0
    %296 = vmatpush1.bf16.msra.mxu0 0
    %297 = vmatprep.subr.bf16.mxu0 0
    %298 = vmatpush1.bf16.msra.mxu0 0
    %299 = vmatprep.subr.bf16.mxu0 0
    %300 = vmatpush1.bf16.msra.mxu0 0
    %301 = vmatprep.subr.bf16.mxu0 0
    %302 = vmatpush1.bf16.msra.mxu0 0
    %303 = vmatprep.mubr.bf16.mxu0 0
    %304 = vmatmul.mubr.bf16.gmra.mrb[0].mxu0 %v206
    %v305 = vpop.f32.mrb[0].mxu0
    %v306 = vadd.f32 0.0, %v305
    %v307 = vpop.f32.mrb[0].mxu0
    %v308 = vpop.f32.mrb[0].mxu0
    %v309 = vpop.f32.mrb[0].mxu0
    %310 = vdwg.mxu0
    %v311 = vtanh.pop %v306
    %v312 = vpack.c.bf16 %v311, %v311
    %313 = vst [vmem:[%s4] sm:$0xf] %v312
    // Predicated region
    $region26: #{_forward_padded.1} parent=1 // pred_check
      _
    $region27: #{_forward_padded.1} parent=1 // pred_check_branch
      %315 = sbr.rel (0) target = $region29
    $region28: #{_forward_padded.1} parent=1 // pred_region
      _
    $region29: #{_forward_padded.1} parent=1 // pred_fallthru
      _
    // Predicated region
    $region30: #{_forward_padded.1} parent=1 // pred_check
      _
    $region31: #{_forward_padded.1} parent=1 // pred_check_branch
      %317 = sbr.rel (0) target = $region33
    $region32: #{_forward_padded.1} parent=1 // pred_region
      _
    $region33: #{_forward_padded.1} parent=1 // pred_fallthru
      _
    %318 = vsyncpa [#allocation3], 1
    %319 = vsyncpa [#allocation5], 1

</llo_original>
